<compile_context>
chip_gen: v6e
topology: v6e:2x2x1
jax: 0.10.0
libtpu: 0.0.40
codegen_flags: <defaults>
</compile_context>

<pallas_src>
import functools

import jax
import jax.numpy as jnp
from jax.experimental import pallas as pl
from jax.experimental.pallas import tpu as pltpu

EPS = 1e-5          # nn.BatchNorm1d default eps
DROP_RATE = 0.5     # nn.Dropout default in the module
TILE = 128          # node-axis tile (lane-dense) and adjacency reduction tile


def _gcn_agg_kernel(x_t_ref, a_t_ref, w_t_ref, b_ref, h_t_ref, acc_ref):
    """Pass 1: h^T[:, i] = W^T @ (X^T @ A_hat^T)[:, i] + b   (tiled over i, k)."""
    k = pl.program_id(1)

    @pl.when(k == 0)
    def _():
        acc_ref[...] = jnp.zeros_like(acc_ref)

    # [C_in, TILE] += [C_in, TILE](bf16) @ [TILE, TILE](bf16)  -> f32 on MXU
    acc_ref[...] += jnp.dot(x_t_ref[...], a_t_ref[...],
                            preferred_element_type=jnp.float32)

    @pl.when(k == pl.num_programs(1) - 1)
    def _():
        # [C_out, C_in] @ [C_in, TILE] + [C_out, 1]
        h = jnp.dot(w_t_ref[...], acc_ref[...],
                    preferred_element_type=jnp.float32) + b_ref[...]
        h_t_ref[...] = h.astype(h_t_ref.dtype)


def _bn_silu_dropout_kernel(h_t_ref, scale_ref, shift_ref, bits_ref, o_ref,
                            *, keep_threshold, keep_scale):
    """Pass 2 (lane-dense): folded-affine BatchNorm -> SiLU -> dropout."""
    hn = h_t_ref[...] * scale_ref[...] + shift_ref[...]
    act = hn * jax.nn.sigmoid(hn)                       # SiLU
    keep = bits_ref[...] >= jnp.uint32(keep_threshold)  # P(keep) = 1 - p
    o_ref[...] = jnp.where(keep, act * keep_scale, 0.0).astype(o_ref.dtype)


def gnn_layer_pallas(x, edge_index, w, b, gamma, beta, seed,
                     drop_rate=DROP_RATE, eps=EPS):
    """x: [N, C_in] f32, edge_index: [2, E] i32 (row=source, col=target)."""
    n, c_in = x.shape
    c_out = w.shape[1]
    n_pad = TILE * pl.cdiv(n, TILE)
    grid_m = n_pad // TILE
    grid_k = n_pad // TILE

    # --- glue: dense GCN-normalized adjacency A_hat = D^-1/2 (A+I) D^-1/2,
    #           built directly transposed (source, target) and in bf16 -------
    row, col = edge_index[0], edge_index[1]
    loops = jnp.arange(n, dtype=edge_index.dtype)
    row_f = jnp.concatenate([row, loops])
    col_f = jnp.concatenate([col, loops])
    deg = jnp.zeros((n,), jnp.float32).at[col_f].add(1.0)
    dinv = jnp.where(deg > 0, deg ** -0.5, 0.0)
    norm = dinv[row_f] * dinv[col_f]
    a_t = (jnp.zeros((n_pad, n_pad), jnp.float32)
           .at[row_f, col_f].add(norm)).astype(jnp.bfloat16)   # A_hat^T, padded

    x_t = jnp.pad(x.astype(jnp.float32),
                  ((0, n_pad - n), (0, 0))).astype(jnp.bfloat16).T  # [C_in, Np]
    w_t = w.astype(jnp.float32).T                                   # [C_out, C_in]
    b2 = b.astype(jnp.float32).reshape(c_out, 1)

    cost = pl.CostEstimate(
        flops=2 * n_pad * n_pad * c_in + 2 * n_pad * c_in * c_out,
        transcendentals=0,
        bytes_accessed=int(a_t.size) * 2 + int(x_t.size) * 2 + n_pad * c_out * 4,
    )

    # ---- pass 1: tiled GCN aggregation (A_hat stream is double-buffered) ----
    h_t = pl.pallas_call(
        _gcn_agg_kernel,
        out_shape=jax.ShapeDtypeStruct((c_out, n_pad), jnp.float32),
        grid=(grid_m, grid_k),
        in_specs=[
            pl.BlockSpec((c_in, TILE), lambda i, k: (0, k)),
            pl.BlockSpec((TILE, TILE), lambda i, k: (k, i)),
            pl.BlockSpec((c_out, c_in), lambda i, k: (0, 0)),
            pl.BlockSpec((c_out, 1), lambda i, k: (0, 0)),
        ],
        out_specs=pl.BlockSpec((c_out, TILE), lambda i, k: (0, i)),
        scratch_shapes=[pltpu.VMEM((c_in, TILE), jnp.float32)],
        compiler_params=pltpu.CompilerParams(
            dimension_semantics=("parallel", "arbitrary"),
            vmem_limit_bytes=32 * 1024 * 1024),
        cost_estimate=cost,
    )(x_t, a_t, w_t, b2)

    # ---- BN batch statistics over real nodes only (tiny [C_out, N] reduce) --
    h_valid = h_t[:, :n]
    mean = jnp.mean(h_valid, axis=1, keepdims=True)
    var = jnp.maximum(
        jnp.mean(jnp.square(h_valid), axis=1, keepdims=True) - jnp.square(mean),
        0.0)                                           # biased var (training BN)
    inv = jax.lax.rsqrt(var + eps)
    scale = gamma.astype(jnp.float32).reshape(c_out, 1) * inv
    shift = beta.astype(jnp.float32).reshape(c_out, 1) - mean * scale

    # ---- dropout randomness: raw uint32 bits + threshold compare ------------
    bits = jax.random.bits(jax.random.PRNGKey(seed), (c_out, n_pad), jnp.uint32)
    keep_threshold = min(int(round(drop_rate * 4294967296.0)), 4294967295)
    keep_scale = (1.0 / (1.0 - drop_rate)) if drop_rate > 0.0 else 1.0

    tail = functools.partial(_bn_silu_dropout_kernel,
                             keep_threshold=keep_threshold,
                             keep_scale=keep_scale)

    # ---- pass 2: lane-dense elementwise tail, node tiles in parallel --------
    out_t = pl.pallas_call(
        tail,
        out_shape=jax.ShapeDtypeStruct((c_out, n_pad), jnp.float32),
        grid=(grid_m,),
        in_specs=[
            pl.BlockSpec((c_out, TILE), lambda i: (0, i)),
            pl.BlockSpec((c_out, 1), lambda i: (0, 0)),
            pl.BlockSpec((c_out, 1), lambda i: (0, 0)),
            pl.BlockSpec((c_out, TILE), lambda i: (0, i)),
        ],
        out_specs=pl.BlockSpec((c_out, TILE), lambda i: (0, i)),
        compiler_params=pltpu.CompilerParams(
            dimension_semantics=("parallel",)),
    )(h_t, scale, shift, bits)

    return out_t[:, :n].T                               # [N, C_out]


if __name__ == "__main__":
    N, C_IN, C_OUT = 256, 8, 32

    key = jax.random.PRNGKey(0)
    kx, kw, kb = jax.random.split(key, 3)

    x = jax.random.normal(kx, (N, C_IN), dtype=jnp.float32)

    # ring graph, both directions: E = 2N edges
    src = jnp.arange(N, dtype=jnp.int32)
    dst = (src + 1) % N
    edge_index = jnp.stack(
        [jnp.concatenate([src, dst]), jnp.concatenate([dst, src])], axis=0)

    # deterministic parameter init (GCNConv weight/bias, BatchNorm1d gamma/beta)
    w = jax.random.normal(kw, (C_IN, C_OUT), dtype=jnp.float32) * (1.0 / (C_IN ** 0.5))
    b = jax.random.normal(kb, (C_OUT,), dtype=jnp.float32) * 0.01
    gamma = jnp.ones((C_OUT,), jnp.float32)
    beta = jnp.zeros((C_OUT,), jnp.float32)

    out = gnn_layer_pallas(x, edge_index, w, b, gamma, beta, seed=1234)
    jax.block_until_ready(out)
    assert out.shape == (N, C_OUT) and out.dtype == jnp.float32
    assert bool(jnp.all(jnp.isfinite(out)))
    print("KERNEL_OK")
</pallas_src>

<mosaic_0001>
module attributes {stable_mosaic.version = 11 : i64} {
  func.func @_gcn_agg_kernel(%arg0: i32, %arg1: i32, %arg2: memref<8x128xbf16, #tpu.memory_space<vmem>>, %arg3: memref<128x128xbf16, #tpu.memory_space<vmem>>, %arg4: memref<32x8xf32, #tpu.memory_space<vmem>>, %arg5: memref<32x1xf32, #tpu.memory_space<vmem>>, %arg6: memref<32x128xf32, #tpu.memory_space<vmem>>, %arg7: memref<8x128xf32, #tpu.memory_space<vmem>>) attributes {dimension_semantics = [#tpu.dimension_semantics<parallel>, #tpu.dimension_semantics<arbitrary>], iteration_bounds = array<i64: 2, 2>, scalar_prefetch = 0 : i64, scratch_operands = 1 : i64, tpu.core_type = #tpu.core_type<tc>, window_params = [{transform_indices = @transform_0, window_bounds = array<i64: 8, 128>}, {transform_indices = @transform_1, window_bounds = array<i64: 128, 128>}, {pipeline_mode = #tpu.pipeline_mode<synchronous>, transform_indices = @transform_2, window_bounds = array<i64: 32, 8>}, {pipeline_mode = #tpu.pipeline_mode<synchronous>, transform_indices = @transform_3, window_bounds = array<i64: 32, 1>}, {transform_indices = @transform_4, window_bounds = array<i64: 32, 128>}]} {
    %c0_i32 = arith.constant 0 : i32
    %0 = arith.cmpi eq, %arg1, %c0_i32 : i32
    %1 = arith.extui %0 : i1 to i32
    %c0_i32_0 = arith.constant 0 : i32
    %2 = arith.cmpi ne, %1, %c0_i32_0 : i32
    scf.if %2 {
      %cst_9 = arith.constant 0.000000e+00 : f32
      %12 = vector.broadcast %cst_9 : f32 to vector<8x128xf32>
      %c0_10 = arith.constant 0 : index
      %c0_11 = arith.constant 0 : index
      %13 = vector.load %arg7[%c0_10, %c0_11] : memref<8x128xf32, #tpu.memory_space<vmem>>, vector<8x128xf32>
      tpu.vector_store %arg7[%c0_10, %c0_11], %12 {strides = array<i32>} : memref<8x128xf32, #tpu.memory_space<vmem>>, vector<8x128xf32>,
    } else {
    }
    %c0 = arith.constant 0 : index
    %c0_1 = arith.constant 0 : index
    %3 = vector.load %arg7[%c0, %c0_1] : memref<8x128xf32, #tpu.memory_space<vmem>>, vector<8x128xf32>
    %c0_2 = arith.constant 0 : index
    %c0_3 = arith.constant 0 : index
    %4 = vector.load %arg2[%c0_2, %c0_3] : memref<8x128xbf16, #tpu.memory_space<vmem>>, vector<8x128xbf16>
    %c0_4 = arith.constant 0 : index
    %c0_5 = arith.constant 0 : index
    %5 = vector.load %arg3[%c0_4, %c0_5] : memref<128x128xbf16, #tpu.memory_space<vmem>>, vector<128x128xbf16>
    %cst = arith.constant dense<0.000000e+00> : vector<8x128xf32>
    %6 = tpu.matmul %4, %5, %cst {dimension_numbers = #tpu.dot_dimension_numbers<[1], [0], [0], [1], [0, 0, 1, 1], [], []>} : vector<8x128xbf16>, vector<128x128xbf16>, vector<8x128xf32> -> vector<8x128xf32>
    %7 = arith.addf %3, %6 : vector<8x128xf32>
    %c0_6 = arith.constant 0 : index
    %c0_7 = arith.constant 0 : index
    %8 = vector.load %arg7[%c0_6, %c0_7] : memref<8x128xf32, #tpu.memory_space<vmem>>, vector<8x128xf32>
    tpu.vector_store %arg7[%c0_6, %c0_7], %7 {strides = array<i32>} : memref<8x128xf32, #tpu.memory_space<vmem>>, vector<8x128xf32>,
    %c1_i32 = arith.constant 1 : i32
    %9 = arith.cmpi eq, %arg1, %c1_i32 : i32
    %10 = arith.extui %9 : i1 to i32
    %c0_i32_8 = arith.constant 0 : i32
    %11 = arith.cmpi ne, %10, %c0_i32_8 : i32
    scf.if %11 {
      %c0_9 = arith.constant 0 : index
      %c0_10 = arith.constant 0 : index
      %12 = vector.load %arg4[%c0_9, %c0_10] : memref<32x8xf32, #tpu.memory_space<vmem>>, vector<32x8xf32>
      %c0_11 = arith.constant 0 : index
      %c0_12 = arith.constant 0 : index
      %13 = vector.load %arg7[%c0_11, %c0_12] : memref<8x128xf32, #tpu.memory_space<vmem>>, vector<8x128xf32>
      %cst_13 = arith.constant dense<0.000000e+00> : vector<32x128xf32>
      %14 = tpu.matmul %12, %13, %cst_13 {dimension_numbers = #tpu.dot_dimension_numbers<[1], [0], [0], [1], [0, 0, 1, 1], [], []>} : vector<32x8xf32>, vector<8x128xf32>, vector<32x128xf32> -> vector<32x128xf32>
      %c0_14 = arith.constant 0 : index
      %c0_15 = arith.constant 0 : index
      %15 = vector.load %arg5[%c0_14, %c0_15] : memref<32x1xf32, #tpu.memory_space<vmem>>, vector<32x1xf32>
      %16 = vector.broadcast %15 : vector<32x1xf32> to vector<32x128xf32>
      %17 = arith.addf %14, %16 : vector<32x128xf32>
      %c0_16 = arith.constant 0 : index
      %c0_17 = arith.constant 0 : index
      %18 = vector.load %arg6[%c0_16, %c0_17] : memref<32x128xf32, #tpu.memory_space<vmem>>, vector<32x128xf32>
      tpu.vector_store %arg6[%c0_16, %c0_17], %17 {strides = array<i32>} : memref<32x128xf32, #tpu.memory_space<vmem>>, vector<32x128xf32>,
    } else {
    }
    return
  }
  func.func @transform_0(%arg0: i32, %arg1: i32) -> (i32, i32) {
    %c0_i32 = arith.constant 0 : i32
    %c0_i32_0 = arith.constant 0 : i32
    return %c0_i32, %arg1 : i32, i32
  }
  func.func @transform_1(%arg0: i32, %arg1: i32) -> (i32, i32) {
    %c0_i32 = arith.constant 0 : i32
    return %arg1, %arg0 : i32, i32
  }
  func.func @transform_2(%arg0: i32, %arg1: i32) -> (i32, i32) {
    %c0_i32 = arith.constant 0 : i32
    %c0_i32_0 = arith.constant 0 : i32
    %c0_i32_1 = arith.constant 0 : i32
    return %c0_i32, %c0_i32_0 : i32, i32
  }
  func.func @transform_3(%arg0: i32, %arg1: i32) -> (i32, i32) {
    %c0_i32 = arith.constant 0 : i32
    %c0_i32_0 = arith.constant 0 : i32
    %c0_i32_1 = arith.constant 0 : i32
    return %c0_i32, %c0_i32_0 : i32, i32
  }
  func.func @transform_4(%arg0: i32, %arg1: i32) -> (i32, i32) {
    %c0_i32 = arith.constant 0 : i32
    %c0_i32_0 = arith.constant 0 : i32
    return %c0_i32, %arg0 : i32, i32
  }
}

</mosaic_0001>

<llo_original>
// kernel: tpu_custom_call.1
$region0: #{tpu_custom_call.1}
  #allocation0 [shape = 'u32[]', space=smem, size = 0x4, offset = 0x4, fixed_abs, tag = 'smem constant byte address 0x4 - core index']
  #allocation1 [shape = 'u32[144,128]{1,0:T(1,128)}', space=vmem, size = 0x12000, scoped, tag = 'internal scratch']
  #allocation2 [shape = 'f32[8,128]{1,0:T(8,128)}', space=vmem, size = 0x1000, scoped, tag = 'scratch operand']
  %s0 = inlined_call_operand.vmem [shape: bf16[8,256], index: 0, kind: input, shape index: {}]
  %s1 = inlined_call_operand.hbm [shape: bf16[256,256], index: 1, kind: input, shape index: {}]
  %s2 = inlined_call_operand.vmem [shape: f32[32,8], index: 2, kind: input, shape index: {}]
  %s3 = inlined_call_operand.vmem [shape: f32[32,1], index: 3, kind: input, shape index: {}]
  %s4 = inlined_call_operand.hbm [shape: f32[32,256], index: 4, kind: output, shape index: {}]
  %s5 = sld [smem:[#allocation0]]
  $region61: #{tpu_custom_call.1} parent=0
    _
  %s7 = ssub.s32 1, %s5
  %s8 = scalar_select 0, %s7, %s5
  $region1: #{tpu_custom_call.1} parent=0
    #allocation3 [shape = 'u8[65536]{0}', space=vmem, size = 0x10000, scoped, tag = 'input window, operand 1']
    #allocation4 [shape = 's32[2]{0}', space=sflag, size = 0x8, scoped, tag = 'scoped memory for tpu_custom_call.1']
    #allocation5 [shape = 's32[2]{0}', space=sflag, size = 0x8, scoped, tag = 'scoped memory for tpu_custom_call.1']
    #allocation6 [shape = 'u8[32768]{0}', space=vmem, size = 0x8000, scoped, tag = 'output window, operand 0']
    %9 = vsyncpa [#allocation4], 0
    %s10 = scalar_lea.sflag [#allocation4], 1
    %11 = vsyncpa %s10, 0
    %12 = vsyncpa [#allocation5], 0
    %s13 = scalar_lea.sflag [#allocation5], 1
    %14 = vsyncpa %s13, 0
    loop: start=0, step=1, limit=6
    $region2: #{tpu_custom_call.1} parent=1 // loop_pre_header
      _
    $region3: #{tpu_custom_call.1} parent=1 // loop_header
      %s16 = sphi 0, %s20
      %p17 = scmp.ge.s32.totalorder %s16, 6
      %s23 = sphi 0, %s35
      %s24 = sphi 0, %s31
      %s25 = sphi 0, %s23
      %s26 = sphi 0, %s24
      %s27 = sphi 0, %s25
      %s28 = sphi 0, %s26
      %s38 = sphi 0, %s40
      %s41 = sphi 0, %s38
      %s42 = sphi 0, %s41
      %s58 = sphi 0, %s42
      %s66 = sphi 0, %s68
      %s69 = sphi 0, %s66
      %s70 = sphi 0, %s69
      %s86 = sphi 0, %s70
      %s90 = sphi 0, %s90
      %s92 = sphi 0, %s90
      %s93 = sphi 0, %s92
      %s107 = sphi 0, %s93
      %s111 = sphi 0, %s111
      %s113 = sphi 0, %s111
      %s114 = sphi 0, %s113
      %s128 = sphi 0, %s114
      %s134 = sphi 0, %s136
      %s137 = sphi 0, %s134
      %s138 = sphi 0, %s137
      %s154 = sphi 0, %s138
    $region4: #{tpu_custom_call.1} parent=1 // loop_header_branch
      %19 = sbr.rel (%p17) target = $region8
    $region5: #{tpu_custom_call.1} parent=1 // loop_body
      %s21 = ssub.s32 %s16, 1
      %s22 = ssub.s32 %s16, 2
      %s29 = sadd.s32 1, %s24
      %p30 = scmp.ge.s32.totalorder %s29, 2
      %s31 = scalar_select %p30, 0, %s29
      %s32 = sadd.s32 1, %s23
      %s33 = scalar_select %p30, %s32, %s23
      %p34 = scmp.ge.s32.totalorder %s33, 2
      %s35 = scalar_select %p34, 0, %s33
      %s36 = ssub.s32 %s24, %s31
      %p37 = scmp.eq.s32.totalorder %s36, 0
      %s39 = sadd.s32 %s38, 1
      %s40 = scalar_select %p37, %s38, %s39
      %p43 = pneg %p37
      %p44 = scmp.eq.s32.totalorder %s16, 3
      %p45 = por %p43, %p44
      %p46 = scmp.ne.s32.totalorder %s38, %s41
      %p47 = scmp.eq.s32.totalorder %s16, 0
      %p48 = por %p46, %p47
      %p49 = scmp.ne.s32.totalorder %s38, %s41
      %p50 = scmp.eq.s32.totalorder %s21, 3
      %p51 = por %p49, %p50
      %p52 = scmp.ne.s32.totalorder %s41, %s42
      %p53 = scmp.eq.s32.totalorder %s21, 0
      %p54 = por %p52, %p53
      %p55 = scmp.ne.s32.totalorder %s41, %s42
      %p56 = scmp.eq.s32.totalorder %s22, 3
      %p57 = por %p55, %p56
      %p59 = scmp.ne.s32.totalorder %s42, %s58
      %p60 = scmp.eq.s32.totalorder %s22, 0
      %p61 = por %p59, %p60
      %s62 = ssub.s32 %s24, %s31
      %s63 = ssub.s32 %s23, %s35
      %s64 = sor.u32 %s62, %s63
      %p65 = scmp.eq.s32.totalorder %s64, 0
      %s67 = sadd.s32 %s66, 1
      %s68 = scalar_select %p65, %s66, %s67
      %p71 = pneg %p65
      %p72 = scmp.eq.s32.totalorder %s16, 3
      %p73 = por %p71, %p72
      %p74 = scmp.ne.s32.totalorder %s66, %s69
      %p75 = scmp.eq.s32.totalorder %s16, 0
      %p76 = por %p74, %p75
      %p77 = scmp.ne.s32.totalorder %s66, %s69
      %p78 = scmp.eq.s32.totalorder %s21, 3
      %p79 = por %p77, %p78
      %p80 = scmp.ne.s32.totalorder %s69, %s70
      %p81 = scmp.eq.s32.totalorder %s21, 0
      %p82 = por %p80, %p81
      %p83 = scmp.ne.s32.totalorder %s69, %s70
      %p84 = scmp.eq.s32.totalorder %s22, 3
      %p85 = por %p83, %p84
      %p87 = scmp.ne.s32.totalorder %s70, %s86
      %p88 = scmp.eq.s32.totalorder %s22, 0
      %p89 = por %p87, %p88
      %s91 = sadd.s32 %s90, 1
      %p94 = scmp.eq.s32.totalorder %s16, 3
      %p95 = scmp.ne.s32.totalorder %s90, %s92
      %p96 = scmp.eq.s32.totalorder %s16, 0
      %p97 = por %p95, %p96
      %p98 = scmp.ne.s32.totalorder %s90, %s92
      %p99 = scmp.eq.s32.totalorder %s21, 3
      %p100 = por %p98, %p99
      %p101 = scmp.ne.s32.totalorder %s92, %s93
      %p102 = scmp.eq.s32.totalorder %s21, 0
      %p103 = por %p101, %p102
      %p104 = scmp.ne.s32.totalorder %s92, %s93
      %p105 = scmp.eq.s32.totalorder %s22, 3
      %p106 = por %p104, %p105
      %p108 = scmp.ne.s32.totalorder %s93, %s107
      %p109 = scmp.eq.s32.totalorder %s22, 0
      %p110 = por %p108, %p109
      %s112 = sadd.s32 %s111, 1
      %p115 = scmp.eq.s32.totalorder %s16, 3
      %p116 = scmp.ne.s32.totalorder %s111, %s113
      %p117 = scmp.eq.s32.totalorder %s16, 0
      %p118 = por %p116, %p117
      %p119 = scmp.ne.s32.totalorder %s111, %s113
      %p120 = scmp.eq.s32.totalorder %s21, 3
      %p121 = por %p119, %p120
      %p122 = scmp.ne.s32.totalorder %s113, %s114
      %p123 = scmp.eq.s32.totalorder %s21, 0
      %p124 = por %p122, %p123
      %p125 = scmp.ne.s32.totalorder %s113, %s114
      %p126 = scmp.eq.s32.totalorder %s22, 3
      %p127 = por %p125, %p126
      %p129 = scmp.ne.s32.totalorder %s114, %s128
      %p130 = scmp.eq.s32.totalorder %s22, 0
      %p131 = por %p129, %p130
      %s132 = ssub.s32 %s23, %s35
      %p133 = scmp.eq.s32.totalorder %s132, 0
      %s135 = sadd.s32 %s134, 1
      %s136 = scalar_select %p133, %s134, %s135
      %p139 = pneg %p133
      %p140 = scmp.eq.s32.totalorder %s16, 3
      %p141 = por %p139, %p140
      %p142 = scmp.ne.s32.totalorder %s134, %s137
      %p143 = scmp.eq.s32.totalorder %s16, 0
      %p144 = por %p142, %p143
      %p145 = scmp.ne.s32.totalorder %s134, %s137
      %p146 = scmp.eq.s32.totalorder %s21, 3
      %p147 = por %p145, %p146
      %p148 = scmp.ne.s32.totalorder %s137, %s138
      %p149 = scmp.eq.s32.totalorder %s21, 0
      %p150 = por %p148, %p149
      %p151 = scmp.ne.s32.totalorder %s137, %s138
      %p152 = scmp.eq.s32.totalorder %s22, 3
      %p153 = por %p151, %p152
      %p155 = scmp.ne.s32.totalorder %s138, %s154
      %p156 = scmp.eq.s32.totalorder %s22, 0
      %p157 = por %p155, %p156
      %p158 = scmp.le.s32.totalorder 1, %s16
      %p159 = scmp.lt.s32.totalorder %s16, 5
      %p160 = pnand %p158, %p159
      %p161 = pneg %p160
      // Predicated region
      $region9: #{tpu_custom_call.1} parent=5 // pred_check
        _
      $region10: #{tpu_custom_call.1} parent=5 // pred_check_branch
        %163 = sbr.rel (%p160) target = $region12
      $region11: #{tpu_custom_call.1} parent=5 // pred_region
        %s164 = ssub.s32 %s16, 1
        // Predicated region
        $region13: #{tpu_custom_call.1} parent=11 // pred_check
          %p165 = pneg %p103
        $region14: #{tpu_custom_call.1} parent=11 // pred_check_branch
          %167 = sbr.rel (%p165) target = $region16
        $region15: #{tpu_custom_call.1} parent=11 // pred_region
          _
        $region16: #{tpu_custom_call.1} parent=11 // pred_fallthru
          _
        // Predicated region
        $region17: #{tpu_custom_call.1} parent=11 // pred_check
          %p168 = pneg %p124
        $region18: #{tpu_custom_call.1} parent=11 // pred_check_branch
          %170 = sbr.rel (%p168) target = $region20
        $region19: #{tpu_custom_call.1} parent=11 // pred_region
          _
        $region20: #{tpu_custom_call.1} parent=11 // pred_fallthru
          _
      $region12: #{tpu_custom_call.1} parent=5 // pred_fallthru
        _
      %p171 = scmp.lt.s32.totalorder %s16, 4
      // Predicated region
      $region21: #{tpu_custom_call.1} parent=5 // pred_check
        %p172 = pneg %p171
      $region22: #{tpu_custom_call.1} parent=5 // pred_check_branch
        %174 = sbr.rel (%p172) target = $region24
      $region23: #{tpu_custom_call.1} parent=5 // pred_region
        // Predicated region
        $region25: #{tpu_custom_call.1} parent=23 // pred_check
          %p175 = pneg %p48
        $region26: #{tpu_custom_call.1} parent=23 // pred_check_branch
          %177 = sbr.rel (%p175) target = $region28
        $region27: #{tpu_custom_call.1} parent=23 // pred_region
          %p178 = scmp.lt.s32.totalorder %s24, 1
          %s179 = scalar_select %p178, %s24, 1
          %s180 = smul.addr %s179, 4
          %s181 = scalar_lea.vmem %s0, %s180
        $region28: #{tpu_custom_call.1} parent=23 // pred_fallthru
          _
        // Predicated region
        $region29: #{tpu_custom_call.1} parent=23 // pred_check
          %p182 = pneg %p76
        $region30: #{tpu_custom_call.1} parent=23 // pred_check_branch
          %184 = sbr.rel (%p182) target = $region32
        $region31: #{tpu_custom_call.1} parent=23 // pred_region
          %s185 = sand.u32 %s66, 1
          %s186 = scalar_lea.sflag [#allocation4], %s185
          %s187 = sand.u32 %s66, 1
          %s188 = smul.addr %s187, 64
          %s189 = scalar_lea.vmem [#allocation3], %s188
          %s190 = smul.u32 16, %s24
          %s192 = ssub.s32 1024, 1024
          %193 = vsyncadd %s186, %s192
          %s194 = smul.addr %s190, 2
          %s195 = sadd.s32 %s23, %s194
          %s196 = smul.addr %s195, 64
          %s197 = scalar_lea.hbm %s1, %s196
          %s198 = sshll.u32 %s189, 4
          %s199 = int_to_ptr.vmem [resolvable:$true] %s198
          %204 = dma.hbm_to_vmem [thread:$0]  %s197, 1024, %s199, %s186, 128, 64, 4
        $region32: #{tpu_custom_call.1} parent=23 // pred_fallthru
          _
      $region24: #{tpu_custom_call.1} parent=5 // pred_fallthru
        _
      %p205 = scmp.le.s32.totalorder 1, %s16
      %p206 = scmp.lt.s32.totalorder %s16, 5
      %p207 = pnand %p205, %p206
      %p208 = pneg %p207
      // Predicated region
      $region33: #{tpu_custom_call.1} parent=5 // pred_check
        _
      $region34: #{tpu_custom_call.1} parent=5 // pred_check_branch
        %210 = sbr.rel (%p207) target = $region36
      $region35: #{tpu_custom_call.1} parent=5 // pred_region
        %s211 = ssub.s32 %s16, 1
        %s212 = sand.u32 %s69, 1
        %s213 = scalar_lea.sflag [#allocation4], %s212
        %s214 = sand.u32 %s69, 1
        %s215 = smul.addr %s214, 64
        %s216 = scalar_lea.vmem [#allocation3], %s215
        // Predicated region
        $region37: #{tpu_custom_call.1} parent=35 // pred_check
          %p217 = pneg %p82
        $region38: #{tpu_custom_call.1} parent=35 // pred_check_branch
          %219 = sbr.rel (%p217) target = $region40
        $region39: #{tpu_custom_call.1} parent=35 // pred_region
          %220 = dma.done %s213, 1024
        $region40: #{tpu_custom_call.1} parent=35 // pred_fallthru
          _
        %p221 = scmp.lt.s32.totalorder %s26, 1
        %s222 = scalar_select %p221, %s26, 1
        %s223 = smul.addr %s222, 4
        %s224 = scalar_lea.vmem %s0, %s223
        %p225 = pneg %p54
        %p226 = pneg %p51
        %s227 = sand.u32 %s69, 1
        %s228 = scalar_lea.sflag [#allocation4], %s227
        %s229 = sand.u32 %s69, 1
        %s230 = smul.addr %s229, 64
        %s231 = scalar_lea.vmem [#allocation3], %s230
        %p232 = pneg %p82
        %p233 = pneg %p79
        %p234 = pneg %p103
        %p235 = pneg %p100
        %p236 = pneg %p124
        %p237 = pneg %p121
        %p238 = pneg %p150
        %p239 = pneg %p147
        %s240 = sand.u32 %s137, 1
        %s241 = scalar_lea.sflag [#allocation5], %s240
        %s242 = sand.u32 %s137, 1
        %s243 = smul.addr %s242, 32
        %s244 = scalar_lea.vmem [#allocation6], %s243
        %p245 = scmp.lt.s32.totalorder %s26, 1
        %s246 = scalar_select %p245, %s26, 1
        %s247 = smul.addr %s246, 4
        %s248 = scalar_lea.vmem %s0, %s247
        %s249 = smul.u32 16, %s26
        %p251 = scmp.eq.s32.totalorder %s26, 0
        // Predicated region
        $region41: #{tpu_custom_call.1} parent=35 // pred_check
          %p252 = pneg %p251
        $region42: #{tpu_custom_call.1} parent=35 // pred_check_branch
          %254 = sbr.rel (%p252) target = $region44
        $region43: #{tpu_custom_call.1} parent=35 // pred_region
          %255 = vst [vmem:[#allocation2] sm:$0xff] 0.0
        $region44: #{tpu_custom_call.1} parent=35 // pred_fallthru
          _
        %v256 = vld [vmem:[#allocation2] sm:$0xff]
        %v257 = vld [vmem:[%s248] sm:$0xf]
        %v258 = vld [vmem:[%s216] sm:$0xf]
        %v259 = vld [vmem:[%s216 + $0x4] sm:$0xf]
        %v260 = vld [vmem:[%s216 + $0x8] sm:$0xf]
        %v261 = vld [vmem:[%s216 + $0xc] sm:$0xf]
        %v262 = vld [vmem:[%s216 + $0x10] sm:$0xf]
        %v263 = vld [vmem:[%s216 + $0x14] sm:$0xf]
        %v264 = vld [vmem:[%s216 + $0x18] sm:$0xf]
        %v265 = vld [vmem:[%s216 + $0x1c] sm:$0xf]
        %v266 = vld [vmem:[%s216 + $0x20] sm:$0xf]
        %v267 = vld [vmem:[%s216 + $0x24] sm:$0xf]
        %v268 = vld [vmem:[%s216 + $0x28] sm:$0xf]
        %v269 = vld [vmem:[%s216 + $0x2c] sm:$0xf]
        %v270 = vld [vmem:[%s216 + $0x30] sm:$0xf]
        %v271 = vld [vmem:[%s216 + $0x34] sm:$0xf]
        %v272 = vld [vmem:[%s216 + $0x38] sm:$0xf]
        %v273 = vld [vmem:[%s216 + $0x3c] sm:$0xf]
        %v290 = vunpack.c.l.b16 %v258
        %v291 = vunpack.c.l.b16 %v259
        %v292 = vunpack.c.l.b16 %v260
        %v293 = vunpack.c.l.b16 %v261
        %v294 = vunpack.c.l.b16 %v262
        %v295 = vunpack.c.l.b16 %v263
        %v296 = vunpack.c.l.b16 %v264
        %v297 = vunpack.c.l.b16 %v265
        %v298 = vunpack.c.l.b16 %v266
        %v299 = vunpack.c.l.b16 %v267
        %v300 = vunpack.c.l.b16 %v268
        %v301 = vunpack.c.l.b16 %v269
        %v302 = vunpack.c.l.b16 %v270
        %v303 = vunpack.c.l.b16 %v271
        %v304 = vunpack.c.l.b16 %v272
        %v305 = vunpack.c.l.b16 %v273
        %v306 = vpack.c.b16 %v291, %v290
        %v307 = vpack.c.b16 %v293, %v292
        %v308 = vpack.c.b16 %v295, %v294
        %v309 = vpack.c.b16 %v297, %v296
        %v310 = vpack.c.b16 %v299, %v298
        %v311 = vpack.c.b16 %v301, %v300
        %v312 = vpack.c.b16 %v303, %v302
        %v313 = vpack.c.b16 %v305, %v304
        %322 = vmatprep.subr.bf16.mxu0 0
        %323 = vmatpush1.bf16.msra.mxu0 %v313
        %324 = vmatprep.subr.bf16.mxu0 0
        %325 = vmatpush1.bf16.msra.mxu0 %v312
        %326 = vmatprep.subr.bf16.mxu0 0
        %327 = vmatpush1.bf16.msra.mxu0 %v311
        %328 = vmatprep.subr.bf16.mxu0 0
        %329 = vmatpush1.bf16.msra.mxu0 %v310
        %330 = vmatprep.subr.bf16.mxu0 0
        %331 = vmatpush1.bf16.msra.mxu0 %v309
        %332 = vmatprep.subr.bf16.mxu0 0
        %333 = vmatpush1.bf16.msra.mxu0 %v308
        %334 = vmatprep.subr.bf16.mxu0 0
        %335 = vmatpush1.bf16.msra.mxu0 %v307
        %336 = vmatprep.subr.bf16.mxu0 0
        %337 = vmatpush1.bf16.msra.mxu0 %v306
        %338 = vmatprep.subr.bf16.mxu0 0
        %339 = vmatpush2.bf16.msra.mxu0 0
        %340 = vmatprep.subr.bf16.mxu0 0
        %341 = vmatpush2.bf16.msra.mxu0 0
        %342 = vmatprep.subr.bf16.mxu0 0
        %343 = vmatpush2.bf16.msra.mxu0 0
        %344 = vmatprep.subr.bf16.mxu0 0
        %345 = vmatpush2.bf16.msra.mxu0 0
        %346 = vmatprep.subr.bf16.mxu0 0
        %347 = vmatpush2.bf16.msra.mxu0 0
        %348 = vmatprep.subr.bf16.mxu0 0
        %349 = vmatpush2.bf16.msra.mxu0 0
        %350 = vmatprep.subr.bf16.mxu0 0
        %351 = vmatpush2.bf16.msra.mxu0 0
        %352 = vmatprep.subr.bf16.mxu0 0
        %353 = vmatpush2.bf16.msra.mxu0 0
        %354 = vmatprep.mubr.bf16.mxu0 0
        %355 = vmatmul.mubr.bf16.gmra.mxu0 %v257
        %v356 = vpop.f32.mrf.mxu0
        %v357 = vadd.f32 0.0, %v356
        %v358 = vpop.f32.mrf.mxu0
        %v359 = vpop.f32.mrf.mxu0
        %v360 = vpop.f32.mrf.mxu0
        %361 = vdwg.mxu0
        %v362 = vadd.f32 %v256, %v357
        %363 = vst [vmem:[#allocation2] sm:$0xff] %v362
        %p364 = scmp.eq.s32.totalorder %s26, 1
        // Predicated region
        $region45: #{tpu_custom_call.1} parent=35 // pred_check
          %p365 = pneg %p364
        $region46: #{tpu_custom_call.1} parent=35 // pred_check_branch
          %367 = sbr.rel (%p365) target = $region48
        $region47: #{tpu_custom_call.1} parent=35 // pred_region
          %v368 = vld [vmem:[%s2] sm:$0xff]
          %v369 = vld [vmem:[%s2 + $0x8] sm:$0xff]
          %v370 = vld [vmem:[%s2 + $0x10] sm:$0xff]
          %v371 = vld [vmem:[%s2 + $0x18] sm:$0xff]
          %v372 = vld [vmem:[#allocation2] sm:$0xff]
          %v373 = vld [vmem:[%s3] sm:$0xff]
          %v374 = vld [vmem:[%s3 + $0x8] sm:$0xff]
          %v375 = vld [vmem:[%s3 + $0x10] sm:$0xff]
          %v376 = vld [vmem:[%s3 + $0x18] sm:$0xff]
          %378 = vset.pattern.permute.xlu0 0
          %379 = vperm.xlu0 %378, %v373
          %v380 = vpop.permute.xlu0 %379
          %383 = vset.pattern.permute.xlu0 0
          %384 = vperm.xlu0 %383, %v374
          %v385 = vpop.permute.xlu0 %384
          %388 = vset.pattern.permute.xlu0 0
          %389 = vperm.xlu0 %388, %v375
          %v390 = vpop.permute.xlu0 %389
          %393 = vset.pattern.permute.xlu0 0
          %394 = vperm.xlu0 %393, %v376
          %v395 = vpop.permute.xlu0 %394
          %vm397 = vcmask 64512
          %v399 = vsel %vm397, %v368, 0
          %v402 = vsel %vm397, %v369, 0
          %v405 = vsel %vm397, %v370, 0
          %v408 = vsel %vm397, %v371, 0
          %410 = vmatprep.subr.mxu0 0.0
          %411 = vmatpush1.msra.mxu0 0.0
          %412 = vmatprep.subr.mxu0 0.0
          %413 = vmatpush1.msra.mxu0 0.0
          %414 = vmatprep.subr.mxu0 0.0
          %415 = vmatpush1.msra.mxu0 0.0
          %416 = vmatprep.subr.mxu0 0.0
          %417 = vmatpush1.msra.mxu0 0.0
          %418 = vmatprep.subr.mxu0 0.0
          %419 = vmatpush1.msra.mxu0 0.0
          %420 = vmatprep.subr.mxu0 0.0
          %421 = vmatpush1.msra.mxu0 0.0
          %422 = vmatprep.subr.mxu0 0.0
          %423 = vmatpush1.msra.mxu0 0.0
          %424 = vmatprep.subr.mxu0 0.0
          %425 = vmatpush1.msra.mxu0 0.0
          %426 = vmatprep.subr.mxu0 0.0
          %427 = vmatpush1.msra.mxu0 0.0
          %428 = vmatprep.subr.mxu0 0.0
          %429 = vmatpush1.msra.mxu0 0.0
          %430 = vmatprep.subr.mxu0 0.0
          %431 = vmatpush1.msra.mxu0 0.0
          %432 = vmatprep.subr.mxu0 0.0
          %433 = vmatpush1.msra.mxu0 0.0
          %434 = vmatprep.subr.mxu0 0.0
          %435 = vmatpush1.msra.mxu0 0.0
          %436 = vmatprep.subr.mxu0 0.0
          %437 = vmatpush1.msra.mxu0 0.0
          %438 = vmatprep.subr.mxu0 0.0
          %439 = vmatpush1.msra.mxu0 0.0
          %440 = vmatprep.subr.mxu0 0.0
          %441 = vmatpush1.msra.mxu0 %v372
          %442 = vmatprep.subr.mxu0 0.0
          %443 = vmatpush2.msra.mxu0 0.0
          %444 = vmatprep.subr.mxu0 0.0
          %445 = vmatpush2.msra.mxu0 0.0
          %446 = vmatprep.subr.mxu0 0.0
          %447 = vmatpush2.msra.mxu0 0.0
          %448 = vmatprep.subr.mxu0 0.0
          %449 = vmatpush2.msra.mxu0 0.0
          %450 = vmatprep.subr.mxu0 0.0
          %451 = vmatpush2.msra.mxu0 0.0
          %452 = vmatprep.subr.mxu0 0.0
          %453 = vmatpush2.msra.mxu0 0.0
          %454 = vmatprep.subr.mxu0 0.0
          %455 = vmatpush2.msra.mxu0 0.0
          %456 = vmatprep.subr.mxu0 0.0
          %457 = vmatpush2.msra.mxu0 0.0
          %458 = vmatprep.subr.mxu0 0.0
          %459 = vmatpush2.msra.mxu0 0.0
          %460 = vmatprep.subr.mxu0 0.0
          %461 = vmatpush2.msra.mxu0 0.0
          %462 = vmatprep.subr.mxu0 0.0
          %463 = vmatpush2.msra.mxu0 0.0
          %464 = vmatprep.subr.mxu0 0.0
          %465 = vmatpush2.msra.mxu0 0.0
          %466 = vmatprep.subr.mxu0 0.0
          %467 = vmatpush2.msra.mxu0 0.0
          %468 = vmatprep.subr.mxu0 0.0
          %469 = vmatpush2.msra.mxu0 0.0
          %470 = vmatprep.subr.mxu0 0.0
          %471 = vmatpush2.msra.mxu0 0.0
          %472 = vmatprep.subr.mxu0 0.0
          %473 = vmatpush2.msra.mxu0 0.0
          %474 = vmatprep.mubr.f32.mxu0 0.0
          %475 = vmatmul.mubr.f32.gmra.mxu0 %v399
          %v476 = vpop.f32.mrf.mxu0
          %v477 = vadd.f32 %v380, %v476
          %v478 = vpop.f32.mrf.mxu0
          %479 = vmatprep.mubr.f32.mxu0 0.0
          %480 = vmatmul.mubr.f32.gmra.mxu0 %v402
          %v481 = vpop.f32.mrf.mxu0
          %v482 = vadd.f32 %v385, %v481
          %v483 = vpop.f32.mrf.mxu0
          %484 = vmatprep.mubr.f32.mxu0 0.0
          %485 = vmatmul.mubr.f32.gmra.mxu0 %v405
          %v486 = vpop.f32.mrf.mxu0
          %v487 = vadd.f32 %v390, %v486
          %v488 = vpop.f32.mrf.mxu0
          %489 = vmatprep.mubr.f32.mxu0 0.0
          %490 = vmatmul.mubr.f32.gmra.mxu0 %v408
          %v491 = vpop.f32.mrf.mxu0
          %v492 = vadd.f32 %v395, %v491
          %v493 = vpop.f32.mrf.mxu0
          %494 = vdwg.mxu0
          %495 = vst [vmem:[%s244] sm:$0xff] %v477
          %496 = vst [vmem:[%s244 + $0x8] sm:$0xff] %v482
          %497 = vst [vmem:[%s244 + $0x10] sm:$0xff] %v487
          %498 = vst [vmem:[%s244 + $0x18] sm:$0xff] %v492
        $region48: #{tpu_custom_call.1} parent=35 // pred_fallthru
          _
        %s499 = sand.u32 %s137, 1
        %s500 = scalar_lea.sflag [#allocation5], %s499
        %s501 = sand.u32 %s137, 1
        %s502 = smul.addr %s501, 32
        %s503 = scalar_lea.vmem [#allocation6], %s502
        // Predicated region
        $region49: #{tpu_custom_call.1} parent=35 // pred_check
          %p504 = pneg %p147
        $region50: #{tpu_custom_call.1} parent=35 // pred_check_branch
          %506 = sbr.rel (%p504) target = $region52
        $region51: #{tpu_custom_call.1} parent=35 // pred_region
          %s508 = ssub.s32 512, 512
          %509 = vsyncadd %s500, %s508
          %s510 = smul.addr %s25, 128
          %s511 = scalar_lea.hbm %s4, %s510
          %s512 = sshll.u32 %s503, 4
          %s513 = int_to_ptr.vmem [resolvable:$true] %s512
          %518 = dma.vmem_to_hbm [thread:$0]  %s513, 512, %s511, %s500, 128, 256, 8
        $region52: #{tpu_custom_call.1} parent=35 // pred_fallthru
          _
      $region36: #{tpu_custom_call.1} parent=5 // pred_fallthru
        _
      %p519 = scmp.le.s32.totalorder 2, %s16
      // Predicated region
      $region53: #{tpu_custom_call.1} parent=5 // pred_check
        %p520 = pneg %p519
      $region54: #{tpu_custom_call.1} parent=5 // pred_check_branch
        %522 = sbr.rel (%p520) target = $region56
      $region55: #{tpu_custom_call.1} parent=5 // pred_region
        %s523 = ssub.s32 %s16, 2
        // Predicated region
        $region57: #{tpu_custom_call.1} parent=55 // pred_check
          %p524 = pneg %p153
        $region58: #{tpu_custom_call.1} parent=55 // pred_check_branch
          %526 = sbr.rel (%p524) target = $region60
        $region59: #{tpu_custom_call.1} parent=55 // pred_region
          %s527 = sand.u32 %s138, 1
          %s528 = scalar_lea.sflag [#allocation5], %s527
          %s529 = sand.u32 %s138, 1
          %s530 = smul.addr %s529, 32
          %s531 = scalar_lea.vmem [#allocation6], %s530
          %532 = dma.done %s528, 512
        $region60: #{tpu_custom_call.1} parent=55 // pred_fallthru
          _
      $region56: #{tpu_custom_call.1} parent=5 // pred_fallthru
        _
    $region6: #{tpu_custom_call.1} parent=1 // loop_footer
      %s20 = sadd.s32 1, %s16
    $region7: #{tpu_custom_call.1} parent=1 // loop_footer_branch
      %15 = sbr.rel target = $region3
    $region8: #{tpu_custom_call.1} parent=1 // loop_exit
      _
    %533 = vsyncpa [#allocation4], 1
    %s534 = scalar_lea.sflag [#allocation4], 1
    %535 = vsyncpa %s534, 1
    %536 = vsyncpa [#allocation5], 1
    %s537 = scalar_lea.sflag [#allocation5], 1
    %538 = vsyncpa %s537, 1

</llo_original>
